<compile_context>
chip_gen: v7x
topology: tpu7x:2x2x1
jax: 0.10.0
libtpu: 0.0.40
codegen_flags: <defaults>
</compile_context>

<pallas_src>
import math
import functools

import jax
import jax.numpy as jnp
import numpy as np
from jax.experimental import pallas as pl
from jax.experimental.pallas import tpu as pltpu


# --------------------------- tiled projection matmul ------------------------

def _matmul_kernel(x_ref, w_ref, o_ref, acc_ref):
    """One (bm, bn) output tile; K is the innermost ("arbitrary") grid axis."""
    @pl.when(pl.program_id(2) == 0)
    def _zero():
        acc_ref[...] = jnp.zeros_like(acc_ref)

    acc_ref[...] += jnp.dot(x_ref[...], w_ref[...],
                            preferred_element_type=jnp.float32)

    @pl.when(pl.program_id(2) == pl.num_programs(2) - 1)
    def _store():
        o_ref[...] = acc_ref[...].astype(o_ref.dtype)


def linear(x2d, w, *, bm=256, bn=256, bk=256, out_dtype=jnp.float32):
    """y = x2d @ w as a tiled, pipelined, bf16-operand MXU matmul.

    Tiles are clamped to the (small) problem size here; real configs should use
    128-multiples on v5e and 256/512-multiples on v6e/v7x, budgeting
    2 * (bm*bk + bk*bn + bm*bn) * 2B against the scoped-VMEM limit.
    """
    M, K = x2d.shape
    K2, N = w.shape
    assert K == K2
    bm, bn, bk = min(bm, M), min(bn, N), min(bk, K)
    assert M % bm == 0 and N % bn == 0 and K % bk == 0, (M, N, K, bm, bn, bk)

    x2d = x2d.astype(jnp.bfloat16)   # bf16 MXU operands, f32 accumulation
    w = w.astype(jnp.bfloat16)

    cost = pl.CostEstimate(
        flops=2 * M * N * K,
        transcendentals=0,
        bytes_accessed=(M * K + K * N) * 2 + M * N * 4,
    )
    return pl.pallas_call(
        _matmul_kernel,
        out_shape=jax.ShapeDtypeStruct((M, N), out_dtype),
        grid=(M // bm, N // bn, K // bk),
        in_specs=[
            pl.BlockSpec((bm, bk), lambda i, j, k: (i, k)),
            pl.BlockSpec((bk, bn), lambda i, j, k: (k, j)),
        ],
        out_specs=pl.BlockSpec((bm, bn), lambda i, j, k: (i, j)),
        scratch_shapes=[pltpu.VMEM((bm, bn), jnp.float32)],
        compiler_params=pltpu.CompilerParams(
            dimension_semantics=("parallel", "parallel", "arbitrary")),
        cost_estimate=cost,
    )(x2d, w)


# --------------------------------- RoPE -------------------------------------

def _rope_kernel(q_ref, k_ref, cos_ref, sin_ref, rot_ref, qo_ref, ko_ref):
    # out[2i]   = x[2i]*cos[i] - x[2i+1]*sin[i]
    # out[2i+1] = x[2i]*sin[i] + x[2i+1]*cos[i]
    # implemented as x*cos2 + (x @ R)*sin2 with R the exact pair-rotation
    # permutation (one +/-1 per row), so no strided even/odd shuffles.
    _, S, H, D = q_ref.shape
    q = q_ref[0].reshape(S * H, D)
    k = k_ref[0].reshape(S * H, D)
    cos = jnp.broadcast_to(cos_ref[...][:, None, :], (S, H, D)).reshape(S * H, D)
    sin = jnp.broadcast_to(sin_ref[...][:, None, :], (S, H, D)).reshape(S * H, D)
    rot = rot_ref[...]
    q_rot = jnp.dot(q, rot, preferred_element_type=jnp.float32)
    k_rot = jnp.dot(k, rot, preferred_element_type=jnp.float32)
    qo_ref[0] = (q * cos + q_rot * sin).reshape(S, H, D)
    ko_ref[0] = (k * cos + k_rot * sin).reshape(S, H, D)


def apply_rope(xq, xk, cos, sin, rot):
    """xq, xk: (B, S, H, D) f32; cos, sin: (S, D//2); rot: (D, D) constant."""
    B, S, H, D = xq.shape
    cos2 = jnp.repeat(cos, 2, axis=-1)   # (S, D): cos2[:, 2i] == cos2[:, 2i+1]
    sin2 = jnp.repeat(sin, 2, axis=-1)
    shape = jax.ShapeDtypeStruct((B, S, H, D), jnp.float32)
    bspec = pl.BlockSpec((1, S, H, D), lambda b: (b, 0, 0, 0))
    sspec = pl.BlockSpec((S, D), lambda b: (0, 0))
    rspec = pl.BlockSpec((D, D), lambda b: (0, 0))
    return pl.pallas_call(
        _rope_kernel,
        out_shape=(shape, shape),
        grid=(B,),
        in_specs=[bspec, bspec, sspec, sspec, rspec],
        out_specs=(bspec, bspec),
        compiler_params=pltpu.CompilerParams(dimension_semantics=("parallel",)),
    )(xq, xk, cos2, sin2, rot)


# ----------------------------- KV-cache writeback ----------------------------

def _cache_update_kernel(new_ref, cache_in_ref, cache_out_ref):
    del cache_in_ref  # aliased with cache_out_ref; only the written blocks change
    cache_out_ref[...] = new_ref[...]


def update_cache(cache, new, start_pos):
    """cache[:B, start_pos:start_pos+S] = new, via aliased Pallas output."""
    MB, MS, H, D = cache.shape
    B, S, _, _ = new.shape
    assert start_pos + S <= MS, "KV-cache overflow (start_pos + seqlen > max_seq_len)"
    return pl.pallas_call(
        _cache_update_kernel,
        out_shape=jax.ShapeDtypeStruct(cache.shape, cache.dtype),
        grid=(B, S),
        in_specs=[
            pl.BlockSpec((1, 1, H, D), lambda b, s: (b, s, 0, 0)),
            pl.BlockSpec((1, 1, H, D), lambda b, s: (b, start_pos + s, 0, 0)),
        ],
        out_specs=pl.BlockSpec((1, 1, H, D), lambda b, s: (b, start_pos + s, 0, 0)),
        input_output_aliases={1: 0},
        compiler_params=pltpu.CompilerParams(
            dimension_semantics=("parallel", "arbitrary")),
    )(new.astype(cache.dtype), cache)


# ----------------------------- flash attention -------------------------------

NEG_INF = float("-inf")


def _flash_attn_kernel(q_ref, k_ref, v_ref, o_ref, m_sc, l_sc, acc_sc,
                       *, scale, kv_block, n_heads, start_pos):
    kv = pl.program_id(1)

    @pl.when(kv == 0)
    def _init():
        m_sc[...] = jnp.full_like(m_sc, NEG_INF)
        l_sc[...] = jnp.zeros_like(l_sc)
        acc_sc[...] = jnp.zeros_like(acc_sc)

    S = q_ref.shape[1]
    Tk = k_ref.shape[1]

    # causal(+prefix) mask generated in-kernel: key_pos <= start_pos + query_row
    q_pos = start_pos + jax.lax.broadcasted_iota(jnp.int32, (S, Tk), 0)
    k_pos = kv * kv_block + jax.lax.broadcasted_iota(jnp.int32, (S, Tk), 1)
    allowed = k_pos <= q_pos

    q = q_ref[0]          # (S, H, D)  f32, resident across the KV loop
    k = k_ref[0]          # (Tk, H, D) f32
    v = v_ref[0]          # (Tk, H, D) f32

    for h in range(n_heads):
        qh = q[:, h, :].astype(jnp.bfloat16)      # (S, D)
        kh = k[:, h, :].astype(jnp.bfloat16)      # (Tk, D)
        vh = v[:, h, :].astype(jnp.bfloat16)      # (Tk, D)

        s = jax.lax.dot_general(qh, kh, (((1,), (1,)), ((), ())),
                                preferred_element_type=jnp.float32) * scale
        s = jnp.where(allowed, s, NEG_INF)

        m_prev = m_sc[h]                                        # (S, 1)
        m_new = jnp.maximum(m_prev, jnp.max(s, axis=-1, keepdims=True))
        alpha = jnp.exp(m_prev - m_new)
        p = jnp.exp(s - m_new)                                  # (S, Tk)
        l_sc[h] = alpha * l_sc[h] + jnp.sum(p, axis=-1, keepdims=True)
        acc_sc[h] = alpha * acc_sc[h] + jnp.dot(
            p.astype(jnp.bfloat16), vh, preferred_element_type=jnp.float32)
        m_sc[h] = m_new

    @pl.when(kv == pl.num_programs(1) - 1)
    def _finalize():
        outs = [acc_sc[h] * pl.reciprocal(l_sc[h], approx=True)
                for h in range(n_heads)]
        o_ref[0] = jnp.stack(outs, axis=1).astype(o_ref.dtype)   # (S, H, D)


def flash_attention(xq, cache_k, cache_v, *, start_pos, kv_len, scale,
                    kv_block=128):
    """xq: (B, S, H, D); caches: (MAX_B, MAX_S, H, D). Returns (B, S, H, D)."""
    B, S, H, D = xq.shape
    MB, MS, Hk, Dk = cache_k.shape
    assert (H, D) == (Hk, Dk)  # TODO(synk): GQA (n_kv_heads != n_heads) not implemented.
    kv_block = min(kv_block, MS)
    n_kv = pl.cdiv(kv_len, kv_block)

    kernel = functools.partial(_flash_attn_kernel, scale=scale,
                               kv_block=kv_block, n_heads=H,
                               start_pos=start_pos)
    cost = pl.CostEstimate(
        flops=4 * B * H * S * kv_len * D,
        transcendentals=B * H * S * kv_len,
        bytes_accessed=(2 * B * S * H * D + 2 * B * kv_len * H * D) * 4,
    )
    return pl.pallas_call(
        kernel,
        out_shape=jax.ShapeDtypeStruct((B, S, H, D), jnp.float32),
        grid=(B, n_kv),
        in_specs=[
            pl.BlockSpec((1, S, H, D), lambda b, kv: (b, 0, 0, 0)),
            pl.BlockSpec((1, kv_block, H, D), lambda b, kv: (b, kv, 0, 0)),
            pl.BlockSpec((1, kv_block, H, D), lambda b, kv: (b, kv, 0, 0)),
        ],
        out_specs=pl.BlockSpec((1, S, H, D), lambda b, kv: (b, 0, 0, 0)),
        scratch_shapes=[
            pltpu.VMEM((H, S, 1), jnp.float32),   # running max
            pltpu.VMEM((H, S, 1), jnp.float32),   # running denominator
            pltpu.VMEM((H, S, D), jnp.float32),   # output accumulator
        ],
        compiler_params=pltpu.CompilerParams(
            dimension_semantics=("parallel", "arbitrary")),
        cost_estimate=cost,
    )(xq, cache_k, cache_v)


# ------------------------------ module wrapper -------------------------------

def attention_forward(params, x, start_pos, cos, sin, cache_k, cache_v):
    """Mirrors Attention.forward. Returns (output, new_cache_k, new_cache_v)."""
    B, S, dim = x.shape
    H, D = params["n_heads"], params["head_dim"]
    HD = H * D

    # fused wq/wk/wv projection: one pass over x, bf16 MXU, f32 accumulation
    x2d = x.reshape(B * S, dim)
    qkv = linear(x2d, params["wqkv"], bm=128, bn=HD, bk=128)    # (B*S, 3*HD) f32
    xq = qkv[:, 0 * HD:1 * HD].reshape(B, S, H, D)
    xk = qkv[:, 1 * HD:2 * HD].reshape(B, S, H, D)
    xv = qkv[:, 2 * HD:3 * HD].reshape(B, S, H, D)

    xq, xk = apply_rope(xq, xk, cos, sin, params["rope_rot"])

    # in-place-style KV-cache writeback (donate caches at a jit boundary to
    # make this a true O(B*S*H*D) store with no full-cache copy).
    cache_k = update_cache(cache_k, xk, start_pos)
    cache_v = update_cache(cache_v, xv, start_pos)

    kv_len = start_pos + S
    out = flash_attention(xq, cache_k, cache_v, start_pos=start_pos,
                          kv_len=kv_len, scale=1.0 / math.sqrt(D), kv_block=16)

    # (B, S, H, D) -> (B, S, H*D): contiguous reshape, no transpose needed.
    y = linear(out.reshape(B * S, HD), params["wo"], bm=128, bn=dim, bk=128)
    return y.reshape(B, S, dim), cache_k, cache_v


# ----------------------------- pure-JAX reference ----------------------------

def reference_forward(params, x, start_pos, cos, sin, mask, cache_k, cache_v):
    B, S, dim = x.shape
    H, D = params["n_heads"], params["head_dim"]
    xq = (x @ params["wq"]).reshape(B, S, H, D)
    xk = (x @ params["wk"]).reshape(B, S, H, D)
    xv = (x @ params["wv"]).reshape(B, S, H, D)

    freqs = cos + 1j * sin  # (S, D//2)

    def rot(t):
        tc = t.reshape(B, S, H, D // 2, 2)
        tc = tc[..., 0] + 1j * tc[..., 1]
        o = tc * freqs[None, :, None, :]
        return jnp.stack([o.real, o.imag], -1).reshape(B, S, H, D).astype(t.dtype)

    xq, xk = rot(xq), rot(xk)
    cache_k = jax.lax.dynamic_update_slice(cache_k, xk, (0, start_pos, 0, 0))
    cache_v = jax.lax.dynamic_update_slice(cache_v, xv, (0, start_pos, 0, 0))
    T = start_pos + S
    keys = jnp.transpose(cache_k[:B, :T], (0, 2, 1, 3))
    values = jnp.transpose(cache_v[:B, :T], (0, 2, 1, 3))
    q = jnp.transpose(xq, (0, 2, 1, 3))
    scores = jnp.einsum("bhsd,bhtd->bhst", q, keys) / math.sqrt(D)
    scores = scores + mask[None, None]
    p = jax.nn.softmax(scores, axis=-1)
    out = jnp.einsum("bhst,bhtd->bhsd", p, values)
    out = jnp.transpose(out, (0, 2, 1, 3)).reshape(B, S, H * D)
    return out @ params["wo"], cache_k, cache_v


# ------------------------------------ main ------------------------------------

if __name__ == "__main__":
    # Small config consistent with ModelArgs structure (lane-dense head_dim=128).
    DIM, H = 256, 2
    D = DIM // H                       # head_dim = 128
    MAX_B, MAX_S = 2, 64               # max_batch_size, max_seq_len
    B, S, start_pos = 2, 16, 16        # this step fills cache positions [16, 32)

    key = jax.random.PRNGKey(0)
    k1, k2, k3, k4, k5 = jax.random.split(key, 5)
    wq = 0.05 * jax.random.normal(k1, (DIM, H * D), jnp.float32)
    wk = 0.05 * jax.random.normal(k2, (DIM, H * D), jnp.float32)
    wv = 0.05 * jax.random.normal(k3, (DIM, H * D), jnp.float32)
    wo = 0.05 * jax.random.normal(k4, (H * D, DIM), jnp.float32)

    # RoPE pair-rotation permutation:  (x @ R)[2i] = -x[2i+1], (x @ R)[2i+1] = x[2i]
    R = np.zeros((D, D), np.float32)
    idx = np.arange(D // 2)
    R[2 * idx + 1, 2 * idx] = -1.0
    R[2 * idx, 2 * idx + 1] = 1.0

    params = {
        "n_heads": H,
        "head_dim": D,
        "wq": wq, "wk": wk, "wv": wv, "wo": wo,
        "wqkv": jnp.concatenate([wq, wk, wv], axis=1),   # fused QKV weight
        "rope_rot": jnp.asarray(R),
    }
    x = jax.random.normal(k5, (B, S, DIM), jnp.float32)

    # freqs_cis (llama precompute_freqs_cis, sliced [start_pos : start_pos+S])
    inv_freq = 1.0 / (10000.0 ** (jnp.arange(0, D, 2, dtype=jnp.float32) / D))
    t = jnp.arange(start_pos, start_pos + S, dtype=jnp.float32)
    angles = jnp.outer(t, inv_freq)              # (S, D//2)
    cos, sin = jnp.cos(angles), jnp.sin(angles)

    cache_k = jnp.zeros((MAX_B, MAX_S, H, D), jnp.float32)
    cache_v = jnp.zeros((MAX_B, MAX_S, H, D), jnp.float32)

    out, new_k, new_v = attention_forward(params, x, start_pos, cos, sin,
                                          cache_k, cache_v)
    out = jax.block_until_ready(out)

    # causal mask of shape (seqlen, start_pos + seqlen) for the f32 reference
    causal = jnp.triu(jnp.full((S, S), -jnp.inf, jnp.float32), k=1)
    mask = jnp.concatenate([jnp.zeros((S, start_pos), jnp.float32), causal], axis=1)
    ref, ref_k, ref_v = reference_forward(params, x, start_pos, cos, sin, mask,
                                          cache_k, cache_v)
    ref = jax.block_until_ready(ref)

    # Kernel uses bf16 MXU operands (f32 accumulation); reference is pure f32,
    # hence the loose-ish tolerances.
    np.testing.assert_allclose(np.asarray(out), np.asarray(ref),
                               rtol=5e-2, atol=5e-2)
    T = start_pos + S
    np.testing.assert_allclose(np.asarray(new_k), np.asarray(ref_k),
                               rtol=2e-2, atol=2e-2)
    np.testing.assert_allclose(np.asarray(new_v), np.asarray(ref_v),
                               rtol=2e-2, atol=2e-2)
    # aliased writeback must leave untouched cache regions intact (zeros here)
    assert not np.any(np.asarray(new_k[:, T:]))
    assert not np.any(np.asarray(new_k[:, :start_pos]))
    print("KERNEL_OK")
</pallas_src>

<mosaic_0001>
module attributes {stable_mosaic.version = 11 : i64} {
  func.func @_matmul_kernel(%arg0: i32, %arg1: i32, %arg2: i32, %arg3: memref<32x128xbf16, #tpu.memory_space<vmem>>, %arg4: memref<128x256xbf16, #tpu.memory_space<vmem>>, %arg5: memref<32x256xf32, #tpu.memory_space<vmem>>, %arg6: memref<32x256xf32, #tpu.memory_space<vmem>>) attributes {dimension_semantics = [#tpu.dimension_semantics<parallel>, #tpu.dimension_semantics<parallel>, #tpu.dimension_semantics<arbitrary>], iteration_bounds = array<i64: 1, 3, 2>, scalar_prefetch = 0 : i64, scratch_operands = 1 : i64, tpu.core_type = #tpu.core_type<tc>, window_params = [{transform_indices = @transform_0, window_bounds = array<i64: 32, 128>}, {transform_indices = @transform_1, window_bounds = array<i64: 128, 256>}, {transform_indices = @transform_2, window_bounds = array<i64: 32, 256>}]} {
    %c0_i32 = arith.constant 0 : i32
    %0 = arith.cmpi eq, %arg2, %c0_i32 : i32
    %1 = arith.extui %0 : i1 to i32
    %c0_i32_0 = arith.constant 0 : i32
    %2 = arith.cmpi ne, %1, %c0_i32_0 : i32
    scf.if %2 {
      %cst_9 = arith.constant 0.000000e+00 : f32
      %12 = vector.broadcast %cst_9 : f32 to vector<32x256xf32>
      %c0_10 = arith.constant 0 : index
      %c0_11 = arith.constant 0 : index
      %13 = vector.load %arg6[%c0_10, %c0_11] : memref<32x256xf32, #tpu.memory_space<vmem>>, vector<32x256xf32>
      tpu.vector_store %arg6[%c0_10, %c0_11], %12 {strides = array<i32>} : memref<32x256xf32, #tpu.memory_space<vmem>>, vector<32x256xf32>,
    } else {
    }
    %c0 = arith.constant 0 : index
    %c0_1 = arith.constant 0 : index
    %3 = vector.load %arg6[%c0, %c0_1] : memref<32x256xf32, #tpu.memory_space<vmem>>, vector<32x256xf32>
    %c0_2 = arith.constant 0 : index
    %c0_3 = arith.constant 0 : index
    %4 = vector.load %arg3[%c0_2, %c0_3] : memref<32x128xbf16, #tpu.memory_space<vmem>>, vector<32x128xbf16>
    %c0_4 = arith.constant 0 : index
    %c0_5 = arith.constant 0 : index
    %5 = vector.load %arg4[%c0_4, %c0_5] : memref<128x256xbf16, #tpu.memory_space<vmem>>, vector<128x256xbf16>
    %cst = arith.constant dense<0.000000e+00> : vector<32x256xf32>
    %6 = tpu.matmul %4, %5, %cst {dimension_numbers = #tpu.dot_dimension_numbers<[1], [0], [0], [1], [0, 0, 1, 1], [], []>} : vector<32x128xbf16>, vector<128x256xbf16>, vector<32x256xf32> -> vector<32x256xf32>
    %7 = arith.addf %3, %6 : vector<32x256xf32>
    %c0_6 = arith.constant 0 : index
    %c0_7 = arith.constant 0 : index
    %8 = vector.load %arg6[%c0_6, %c0_7] : memref<32x256xf32, #tpu.memory_space<vmem>>, vector<32x256xf32>
    tpu.vector_store %arg6[%c0_6, %c0_7], %7 {strides = array<i32>} : memref<32x256xf32, #tpu.memory_space<vmem>>, vector<32x256xf32>,
    %c1_i32 = arith.constant 1 : i32
    %9 = arith.cmpi eq, %arg2, %c1_i32 : i32
    %10 = arith.extui %9 : i1 to i32
    %c0_i32_8 = arith.constant 0 : i32
    %11 = arith.cmpi ne, %10, %c0_i32_8 : i32
    scf.if %11 {
      %c0_9 = arith.constant 0 : index
      %c0_10 = arith.constant 0 : index
      %12 = vector.load %arg6[%c0_9, %c0_10] : memref<32x256xf32, #tpu.memory_space<vmem>>, vector<32x256xf32>
      %c0_11 = arith.constant 0 : index
      %c0_12 = arith.constant 0 : index
      %13 = vector.load %arg5[%c0_11, %c0_12] : memref<32x256xf32, #tpu.memory_space<vmem>>, vector<32x256xf32>
      tpu.vector_store %arg5[%c0_11, %c0_12], %12 {strides = array<i32>} : memref<32x256xf32, #tpu.memory_space<vmem>>, vector<32x256xf32>,
    } else {
    }
    return
  }
  func.func @transform_0(%arg0: i32, %arg1: i32, %arg2: i32) -> (i32, i32) {
    %c0_i32 = arith.constant 0 : i32
    return %arg0, %arg2 : i32, i32
  }
  func.func @transform_1(%arg0: i32, %arg1: i32, %arg2: i32) -> (i32, i32) {
    %c0_i32 = arith.constant 0 : i32
    return %arg2, %arg1 : i32, i32
  }
  func.func @transform_2(%arg0: i32, %arg1: i32, %arg2: i32) -> (i32, i32) {
    %c0_i32 = arith.constant 0 : i32
    return %arg0, %arg1 : i32, i32
  }
}

</mosaic_0001>

<llo_original>
// kernel: tpu_custom_call.1
$region0: #{tpu_custom_call.1}
  #allocation0 [shape = 'u32[]', space=smem, size = 0x4, offset = 0x4, fixed_abs, tag = 'smem constant byte address 0x4 - core index']
  #allocation1 [shape = 'u32[144,128]{1,0:T(1,128)}', space=vmem, size = 0x12000, scoped, tag = 'internal scratch']
  #allocation2 [shape = 'f32[32,256]{1,0:T(8,128)}', space=vmem, size = 0x8000, scoped, tag = 'scratch operand']
  %s0 = inlined_call_operand.hbm [shape: bf16[32,256], index: 0, kind: input, shape index: {}]
  %s1 = inlined_call_operand.hbm [shape: bf16[256,768], index: 1, kind: input, shape index: {}]
  %s2 = inlined_call_operand.hbm [shape: f32[32,768], index: 2, kind: output, shape index: {}]
  %s3 = sld [smem:[#allocation0]]
  $region57: #{tpu_custom_call.1} parent=0
    _
  %s5 = ssub.s32 1, %s3
  %s6 = scalar_select 0, %s5, %s3
  $region1: #{tpu_custom_call.1} parent=0
    #allocation3 [shape = 'u8[16384]{0}', space=vmem, size = 0x4000, scoped, tag = 'input window, operand 0']
    #allocation4 [shape = 's32[2]{0}', space=sflag, size = 0x8, scoped, tag = 'scoped memory for tpu_custom_call.1']
    #allocation5 [shape = 's32[2]{0}', space=sflag, size = 0x8, scoped, tag = 'scoped memory for tpu_custom_call.1']
    #allocation6 [shape = 'u8[131072]{0}', space=vmem, size = 0x20000, scoped, tag = 'input window, operand 1']
    #allocation7 [shape = 's32[2]{0}', space=sflag, size = 0x8, scoped, tag = 'scoped memory for tpu_custom_call.1']
    #allocation8 [shape = 'u8[65536]{0}', space=vmem, size = 0x10000, scoped, tag = 'output window, operand 0']
    %7 = vsyncpa [#allocation4], 0
    %s8 = scalar_lea.sflag [#allocation4], 1
    %9 = vsyncpa %s8, 0
    %10 = vsyncpa [#allocation7], 0
    %s11 = scalar_lea.sflag [#allocation7], 1
    %12 = vsyncpa %s11, 0
    %13 = vsyncpa [#allocation5], 0
    %s14 = scalar_lea.sflag [#allocation5], 1
    %15 = vsyncpa %s14, 0
    loop: start=0, step=1, limit=8
    $region2: #{tpu_custom_call.1} parent=1 // loop_pre_header
      _
    $region3: #{tpu_custom_call.1} parent=1 // loop_header
      %s17 = sphi 0, %s21
      %p18 = scmp.ge.s32.totalorder %s17, 8
      %s24 = sphi 0, %s43
      %s25 = sphi 0, %s39
      %s26 = sphi 0, %s35
      %s27 = sphi 0, %s24
      %s28 = sphi 0, %s25
      %s29 = sphi 0, %s26
      %s30 = sphi 0, %s27
      %s31 = sphi 0, %s28
      %s32 = sphi 0, %s29
      %s48 = sphi 0, %s50
      %s51 = sphi 0, %s48
      %s52 = sphi 0, %s51
      %s68 = sphi 0, %s52
      %s76 = sphi 0, %s78
      %s79 = sphi 0, %s76
      %s80 = sphi 0, %s79
      %s96 = sphi 0, %s80
      %s104 = sphi 0, %s106
      %s107 = sphi 0, %s104
      %s108 = sphi 0, %s107
      %s124 = sphi 0, %s108
    $region4: #{tpu_custom_call.1} parent=1 // loop_header_branch
      %20 = sbr.rel (%p18) target = $region8
    $region5: #{tpu_custom_call.1} parent=1 // loop_body
      %s22 = ssub.s32 %s17, 1
      %s23 = ssub.s32 %s17, 2
      %s33 = sadd.s32 1, %s26
      %p34 = scmp.ge.s32.totalorder %s33, 2
      %s35 = scalar_select %p34, 0, %s33
      %s36 = sadd.s32 1, %s25
      %s37 = scalar_select %p34, %s36, %s25
      %p38 = scmp.ge.s32.totalorder %s37, 3
      %s39 = scalar_select %p38, 0, %s37
      %s40 = sadd.s32 1, %s24
      %s41 = scalar_select %p38, %s40, %s24
      %p42 = scmp.ge.s32.totalorder %s41, 1
      %s43 = scalar_select %p42, 0, %s41
      %s44 = ssub.s32 %s24, %s43
      %s45 = ssub.s32 %s26, %s35
      %s46 = sor.u32 %s44, %s45
      %p47 = scmp.eq.s32.totalorder %s46, 0
      %s49 = sadd.s32 %s48, 1
      %s50 = scalar_select %p47, %s48, %s49
      %p53 = pneg %p47
      %p54 = scmp.eq.s32.totalorder %s17, 5
      %p55 = por %p53, %p54
      %p56 = scmp.ne.s32.totalorder %s48, %s51
      %p57 = scmp.eq.s32.totalorder %s17, 0
      %p58 = por %p56, %p57
      %p59 = scmp.ne.s32.totalorder %s48, %s51
      %p60 = scmp.eq.s32.totalorder %s22, 5
      %p61 = por %p59, %p60
      %p62 = scmp.ne.s32.totalorder %s51, %s52
      %p63 = scmp.eq.s32.totalorder %s22, 0
      %p64 = por %p62, %p63
      %p65 = scmp.ne.s32.totalorder %s51, %s52
      %p66 = scmp.eq.s32.totalorder %s23, 5
      %p67 = por %p65, %p66
      %p69 = scmp.ne.s32.totalorder %s52, %s68
      %p70 = scmp.eq.s32.totalorder %s23, 0
      %p71 = por %p69, %p70
      %s72 = ssub.s32 %s26, %s35
      %s73 = ssub.s32 %s25, %s39
      %s74 = sor.u32 %s72, %s73
      %p75 = scmp.eq.s32.totalorder %s74, 0
      %s77 = sadd.s32 %s76, 1
      %s78 = scalar_select %p75, %s76, %s77
      %p81 = pneg %p75
      %p82 = scmp.eq.s32.totalorder %s17, 5
      %p83 = por %p81, %p82
      %p84 = scmp.ne.s32.totalorder %s76, %s79
      %p85 = scmp.eq.s32.totalorder %s17, 0
      %p86 = por %p84, %p85
      %p87 = scmp.ne.s32.totalorder %s76, %s79
      %p88 = scmp.eq.s32.totalorder %s22, 5
      %p89 = por %p87, %p88
      %p90 = scmp.ne.s32.totalorder %s79, %s80
      %p91 = scmp.eq.s32.totalorder %s22, 0
      %p92 = por %p90, %p91
      %p93 = scmp.ne.s32.totalorder %s79, %s80
      %p94 = scmp.eq.s32.totalorder %s23, 5
      %p95 = por %p93, %p94
      %p97 = scmp.ne.s32.totalorder %s80, %s96
      %p98 = scmp.eq.s32.totalorder %s23, 0
      %p99 = por %p97, %p98
      %s100 = ssub.s32 %s24, %s43
      %s101 = ssub.s32 %s25, %s39
      %s102 = sor.u32 %s100, %s101
      %p103 = scmp.eq.s32.totalorder %s102, 0
      %s105 = sadd.s32 %s104, 1
      %s106 = scalar_select %p103, %s104, %s105
      %p109 = pneg %p103
      %p110 = scmp.eq.s32.totalorder %s17, 5
      %p111 = por %p109, %p110
      %p112 = scmp.ne.s32.totalorder %s104, %s107
      %p113 = scmp.eq.s32.totalorder %s17, 0
      %p114 = por %p112, %p113
      %p115 = scmp.ne.s32.totalorder %s104, %s107
      %p116 = scmp.eq.s32.totalorder %s22, 5
      %p117 = por %p115, %p116
      %p118 = scmp.ne.s32.totalorder %s107, %s108
      %p119 = scmp.eq.s32.totalorder %s22, 0
      %p120 = por %p118, %p119
      %p121 = scmp.ne.s32.totalorder %s107, %s108
      %p122 = scmp.eq.s32.totalorder %s23, 5
      %p123 = por %p121, %p122
      %p125 = scmp.ne.s32.totalorder %s108, %s124
      %p126 = scmp.eq.s32.totalorder %s23, 0
      %p127 = por %p125, %p126
      %p128 = scmp.le.s32.totalorder 1, %s17
      %p129 = scmp.lt.s32.totalorder %s17, 7
      %p130 = pnand %p128, %p129
      %p131 = pneg %p130
      // Predicated region
      $region9: #{tpu_custom_call.1} parent=5 // pred_check
        _
      $region10: #{tpu_custom_call.1} parent=5 // pred_check_branch
        %133 = sbr.rel (%p130) target = $region12
      $region11: #{tpu_custom_call.1} parent=5 // pred_region
        %s134 = ssub.s32 %s17, 1
      $region12: #{tpu_custom_call.1} parent=5 // pred_fallthru
        _
      %p135 = scmp.lt.s32.totalorder %s17, 6
      // Predicated region
      $region13: #{tpu_custom_call.1} parent=5 // pred_check
        %p136 = pneg %p135
      $region14: #{tpu_custom_call.1} parent=5 // pred_check_branch
        %138 = sbr.rel (%p136) target = $region16
      $region15: #{tpu_custom_call.1} parent=5 // pred_region
        // Predicated region
        $region17: #{tpu_custom_call.1} parent=15 // pred_check
          %p139 = pneg %p58
        $region18: #{tpu_custom_call.1} parent=15 // pred_check_branch
          %141 = sbr.rel (%p139) target = $region20
        $region19: #{tpu_custom_call.1} parent=15 // pred_region
          %s142 = sand.u32 %s48, 1
          %s143 = scalar_lea.sflag [#allocation4], %s142
          %s144 = sand.u32 %s48, 1
          %s145 = smul.addr %s144, 16
          %s146 = scalar_lea.vmem [#allocation3], %s145
          %s147 = smul.u32 4, %s24
          %s149 = ssub.s32 256, 256
          %150 = vsyncadd %s143, %s149
          %s151 = smul.addr %s147, 2
          %s152 = sadd.s32 %s26, %s151
          %s153 = smul.addr %s152, 64
          %s154 = scalar_lea.hbm %s0, %s153
          %s155 = sshll.u32 %s146, 4
          %s156 = int_to_ptr.vmem [resolvable:$true] %s155
          %161 = dma.hbm_to_vmem [thread:$0]  %s154, 256, %s156, %s143, 128, 64, 4
        $region20: #{tpu_custom_call.1} parent=15 // pred_fallthru
          _
        // Predicated region
        $region21: #{tpu_custom_call.1} parent=15 // pred_check
          %p162 = pneg %p86
        $region22: #{tpu_custom_call.1} parent=15 // pred_check_branch
          %164 = sbr.rel (%p162) target = $region24
        $region23: #{tpu_custom_call.1} parent=15 // pred_region
          %s165 = sand.u32 %s76, 1
          %s166 = scalar_lea.sflag [#allocation7], %s165
          %s167 = sand.u32 %s76, 1
          %s168 = smul.addr %s167, 128
          %s169 = scalar_lea.vmem [#allocation6], %s168
          %s170 = smul.u32 16, %s26
          %s171 = smul.u32 2, %s25
          %s173 = ssub.s32 2048, 2048
          %174 = vsyncadd %s166, %s173
          %s175 = smul.addr %s170, 6
          %s176 = sadd.s32 %s171, %s175
          %s177 = smul.addr %s176, 64
          %s178 = scalar_lea.hbm %s1, %s177
          %s179 = sshll.u32 %s169, 4
          %s180 = int_to_ptr.vmem [resolvable:$true] %s179
          %185 = dma.hbm_to_vmem [thread:$0]  %s178, 2048, %s180, %s166, 384, 128, 8
        $region24: #{tpu_custom_call.1} parent=15 // pred_fallthru
          _
      $region16: #{tpu_custom_call.1} parent=5 // pred_fallthru
        _
      %p186 = scmp.le.s32.totalorder 1, %s17
      %p187 = scmp.lt.s32.totalorder %s17, 7
      %p188 = pnand %p186, %p187
      %p189 = pneg %p188
      // Predicated region
      $region25: #{tpu_custom_call.1} parent=5 // pred_check
        _
      $region26: #{tpu_custom_call.1} parent=5 // pred_check_branch
        %191 = sbr.rel (%p188) target = $region28
      $region27: #{tpu_custom_call.1} parent=5 // pred_region
        %s192 = ssub.s32 %s17, 1
        %s193 = sand.u32 %s51, 1
        %s194 = scalar_lea.sflag [#allocation4], %s193
        %s195 = sand.u32 %s51, 1
        %s196 = smul.addr %s195, 16
        %s197 = scalar_lea.vmem [#allocation3], %s196
        // Predicated region
        $region29: #{tpu_custom_call.1} parent=27 // pred_check
          %p198 = pneg %p64
        $region30: #{tpu_custom_call.1} parent=27 // pred_check_branch
          %200 = sbr.rel (%p198) target = $region32
        $region31: #{tpu_custom_call.1} parent=27 // pred_region
          %201 = dma.done %s194, 256
        $region32: #{tpu_custom_call.1} parent=27 // pred_fallthru
          _
        %s202 = sand.u32 %s79, 1
        %s203 = scalar_lea.sflag [#allocation7], %s202
        %s204 = sand.u32 %s79, 1
        %s205 = smul.addr %s204, 128
        %s206 = scalar_lea.vmem [#allocation6], %s205
        // Predicated region
        $region33: #{tpu_custom_call.1} parent=27 // pred_check
          %p207 = pneg %p92
        $region34: #{tpu_custom_call.1} parent=27 // pred_check_branch
          %209 = sbr.rel (%p207) target = $region36
        $region35: #{tpu_custom_call.1} parent=27 // pred_region
          %210 = dma.done %s203, 2048
        $region36: #{tpu_custom_call.1} parent=27 // pred_fallthru
          _
        %s211 = sand.u32 %s51, 1
        %s212 = scalar_lea.sflag [#allocation4], %s211
        %s213 = sand.u32 %s51, 1
        %s214 = smul.addr %s213, 16
        %s215 = scalar_lea.vmem [#allocation3], %s214
        %p216 = pneg %p64
        %p217 = pneg %p61
        %s218 = sand.u32 %s79, 1
        %s219 = scalar_lea.sflag [#allocation7], %s218
        %s220 = sand.u32 %s79, 1
        %s221 = smul.addr %s220, 128
        %s222 = scalar_lea.vmem [#allocation6], %s221
        %p223 = pneg %p92
        %p224 = pneg %p89
        %p225 = pneg %p120
        %p226 = pneg %p117
        %s227 = sand.u32 %s107, 1
        %s228 = scalar_lea.sflag [#allocation5], %s227
        %s229 = sand.u32 %s107, 1
        %s230 = smul.addr %s229, 64
        %s231 = scalar_lea.vmem [#allocation8], %s230
        %s232 = smul.u32 4, %s27
        %s233 = smul.u32 16, %s29
        %s234 = smul.u32 2, %s28
        %s235 = smul.u32 4, %s27
        %s236 = smul.u32 2, %s28
        %p238 = scmp.eq.s32.totalorder %s29, 0
        // Predicated region
        $region37: #{tpu_custom_call.1} parent=27 // pred_check
          %p239 = pneg %p238
        $region38: #{tpu_custom_call.1} parent=27 // pred_check_branch
          %241 = sbr.rel (%p239) target = $region40
        $region39: #{tpu_custom_call.1} parent=27 // pred_region
          %242 = vst [vmem:[#allocation2] sm:$0xff] 0.0
          %243 = vst [vmem:[#allocation2 + $0x8] sm:$0xff] 0.0
          %244 = vst [vmem:[#allocation2 + $0x10] sm:$0xff] 0.0
          %245 = vst [vmem:[#allocation2 + $0x18] sm:$0xff] 0.0
          %246 = vst [vmem:[#allocation2 + $0x20] sm:$0xff] 0.0
          %247 = vst [vmem:[#allocation2 + $0x28] sm:$0xff] 0.0
          %248 = vst [vmem:[#allocation2 + $0x30] sm:$0xff] 0.0
          %249 = vst [vmem:[#allocation2 + $0x38] sm:$0xff] 0.0
        $region40: #{tpu_custom_call.1} parent=27 // pred_fallthru
          _
        %v250 = vld [vmem:[#allocation2] sm:$0xff]
        %v251 = vld [vmem:[#allocation2 + $0x8] sm:$0xff]
        %v252 = vld [vmem:[#allocation2 + $0x10] sm:$0xff]
        %v253 = vld [vmem:[#allocation2 + $0x18] sm:$0xff]
        %v254 = vld [vmem:[#allocation2 + $0x20] sm:$0xff]
        %v255 = vld [vmem:[#allocation2 + $0x28] sm:$0xff]
        %v256 = vld [vmem:[#allocation2 + $0x30] sm:$0xff]
        %v257 = vld [vmem:[#allocation2 + $0x38] sm:$0xff]
        %v258 = vld [vmem:[%s197] sm:$0xf]
        %v259 = vld [vmem:[%s197 + $0x4] sm:$0xf]
        %v260 = vld [vmem:[%s197 + $0x8] sm:$0xf]
        %v261 = vld [vmem:[%s197 + $0xc] sm:$0xf]
        %v262 = vld [vmem:[%s206] sm:$0xff]
        %v263 = vld [vmem:[%s206 + $0x8] sm:$0xff]
        %v264 = vld [vmem:[%s206 + $0x10] sm:$0xff]
        %v265 = vld [vmem:[%s206 + $0x18] sm:$0xff]
        %v266 = vld [vmem:[%s206 + $0x20] sm:$0xff]
        %v267 = vld [vmem:[%s206 + $0x28] sm:$0xff]
        %v268 = vld [vmem:[%s206 + $0x30] sm:$0xff]
        %v269 = vld [vmem:[%s206 + $0x38] sm:$0xff]
        %v270 = vld [vmem:[%s206 + $0x40] sm:$0xff]
        %v271 = vld [vmem:[%s206 + $0x48] sm:$0xff]
        %v272 = vld [vmem:[%s206 + $0x50] sm:$0xff]
        %v273 = vld [vmem:[%s206 + $0x58] sm:$0xff]
        %v274 = vld [vmem:[%s206 + $0x60] sm:$0xff]
        %v275 = vld [vmem:[%s206 + $0x68] sm:$0xff]
        %v276 = vld [vmem:[%s206 + $0x70] sm:$0xff]
        %v277 = vld [vmem:[%s206 + $0x78] sm:$0xff]
        %v282 = vunpack.c.l.b16 %v258
        %v283 = vunpack.c.l.b16 %v259
        %v284 = vunpack.c.l.b16 %v260
        %v285 = vunpack.c.l.b16 %v261
        %v286 = vpack.c.b16 %v283, %v282
        %v287 = vpack.c.b16 %v285, %v284
        %v306 = vunpack.c.l.b16 %v262
        %v307 = vunpack.c.h.b16 %v262
        %v308 = vunpack.c.l.b16 %v263
        %v309 = vunpack.c.h.b16 %v263
        %v310 = vunpack.c.l.b16 %v264
        %v311 = vunpack.c.h.b16 %v264
        %v312 = vunpack.c.l.b16 %v265
        %v313 = vunpack.c.h.b16 %v265
        %v314 = vunpack.c.l.b16 %v266
        %v315 = vunpack.c.h.b16 %v266
        %v316 = vunpack.c.l.b16 %v267
        %v317 = vunpack.c.h.b16 %v267
        %v318 = vunpack.c.l.b16 %v268
        %v319 = vunpack.c.h.b16 %v268
        %v320 = vunpack.c.l.b16 %v269
        %v321 = vunpack.c.h.b16 %v269
        %v322 = vunpack.c.l.b16 %v270
        %v323 = vunpack.c.h.b16 %v270
        %v324 = vunpack.c.l.b16 %v271
        %v325 = vunpack.c.h.b16 %v271
        %v326 = vunpack.c.l.b16 %v272
        %v327 = vunpack.c.h.b16 %v272
        %v328 = vunpack.c.l.b16 %v273
        %v329 = vunpack.c.h.b16 %v273
        %v330 = vunpack.c.l.b16 %v274
        %v331 = vunpack.c.h.b16 %v274
        %v332 = vunpack.c.l.b16 %v275
        %v333 = vunpack.c.h.b16 %v275
        %v334 = vunpack.c.l.b16 %v276
        %v335 = vunpack.c.h.b16 %v276
        %v336 = vunpack.c.l.b16 %v277
        %v337 = vunpack.c.h.b16 %v277
        %v338 = vpack.c.b16 %v308, %v306
        %v339 = vpack.c.b16 %v309, %v307
        %v340 = vpack.c.b16 %v312, %v310
        %v341 = vpack.c.b16 %v313, %v311
        %v342 = vpack.c.b16 %v316, %v314
        %v343 = vpack.c.b16 %v317, %v315
        %v344 = vpack.c.b16 %v320, %v318
        %v345 = vpack.c.b16 %v321, %v319
        %v346 = vpack.c.b16 %v324, %v322
        %v347 = vpack.c.b16 %v325, %v323
        %v348 = vpack.c.b16 %v328, %v326
        %v349 = vpack.c.b16 %v329, %v327
        %v350 = vpack.c.b16 %v332, %v330
        %v351 = vpack.c.b16 %v333, %v331
        %v352 = vpack.c.b16 %v336, %v334
        %v353 = vpack.c.b16 %v337, %v335
        %370 = vmatprep.subr.bf16.mxu0 %v339
        %371 = vmatpush1.bf16.msra.mxu0 %v338
        %372 = vmatprep.subr.bf16.mxu0 %v341
        %373 = vmatpush1.bf16.msra.mxu0 %v340
        %374 = vmatprep.subr.bf16.mxu0 %v343
        %375 = vmatpush1.bf16.msra.mxu0 %v342
        %376 = vmatprep.subr.bf16.mxu0 %v345
        %377 = vmatpush1.bf16.msra.mxu0 %v344
        %378 = vmatprep.subr.bf16.mxu0 %v347
        %379 = vmatpush1.bf16.msra.mxu0 %v346
        %380 = vmatprep.subr.bf16.mxu0 %v349
        %381 = vmatpush1.bf16.msra.mxu0 %v348
        %382 = vmatprep.subr.bf16.mxu0 %v351
        %383 = vmatpush1.bf16.msra.mxu0 %v350
        %384 = vmatprep.subr.bf16.mxu0 %v353
        %385 = vmatpush1.bf16.msra.mxu0 %v352
        %386 = vmatprep.subr.bf16.mxu0 0
        %387 = vmatpush1.bf16.msra.mxu0 0
        %388 = vmatprep.subr.bf16.mxu0 0
        %389 = vmatpush1.bf16.msra.mxu0 0
        %390 = vmatprep.subr.bf16.mxu0 0
        %391 = vmatpush1.bf16.msra.mxu0 0
        %392 = vmatprep.subr.bf16.mxu0 0
        %393 = vmatpush1.bf16.msra.mxu0 0
        %394 = vmatprep.subr.bf16.mxu0 0
        %395 = vmatpush1.bf16.msra.mxu0 0
        %396 = vmatprep.subr.bf16.mxu0 0
        %397 = vmatpush1.bf16.msra.mxu0 0
        %398 = vmatprep.subr.bf16.mxu0 0
        %399 = vmatpush1.bf16.msra.mxu0 0
        %400 = vmatprep.subr.bf16.mxu0 0
        %401 = vmatpush1.bf16.msra.mxu0 0
        %402 = vmatprep.mubr.bf16.mxu0 0
        %403 = vmatmul.mubr.bf16.gmra.mrb[0].mxu0 %v286
        %v404 = vpop.f32.mrb[0].mxu0
        %v405 = vadd.f32 0.0, %v404
        %v406 = vpop.f32.mrb[0].mxu0
        %v407 = vadd.f32 0.0, %v406
        %v408 = vpop.f32.mrb[0].mxu0
        %v409 = vadd.f32 0.0, %v408
        %v410 = vpop.f32.mrb[0].mxu0
        %v411 = vadd.f32 0.0, %v410
        %412 = vmatprep.mubr.bf16.mxu0 0
        %413 = vmatmul.mubr.bf16.gmra.mrb[0].mxu0 %v287
        %v414 = vpop.f32.mrb[0].mxu0
        %v415 = vadd.f32 0.0, %v414
        %v416 = vpop.f32.mrb[0].mxu0
        %v417 = vadd.f32 0.0, %v416
        %v418 = vpop.f32.mrb[0].mxu0
        %v419 = vadd.f32 0.0, %v418
        %v420 = vpop.f32.mrb[0].mxu0
        %v421 = vadd.f32 0.0, %v420
        %422 = vdwg.mxu0
        %v423 = vadd.f32 %v250, %v405
        %v424 = vadd.f32 %v251, %v407
        %v425 = vadd.f32 %v252, %v409
        %v426 = vadd.f32 %v253, %v411
        %v427 = vadd.f32 %v254, %v415
        %v428 = vadd.f32 %v255, %v417
        %v429 = vadd.f32 %v256, %v419
        %v430 = vadd.f32 %v257, %v421
        %431 = vst [vmem:[#allocation2] sm:$0xff] %v423
        %432 = vst [vmem:[#allocation2 + $0x8] sm:$0xff] %v424
        %433 = vst [vmem:[#allocation2 + $0x10] sm:$0xff] %v425
        %434 = vst [vmem:[#allocation2 + $0x18] sm:$0xff] %v426
        %435 = vst [vmem:[#allocation2 + $0x20] sm:$0xff] %v427
        %436 = vst [vmem:[#allocation2 + $0x28] sm:$0xff] %v428
        %437 = vst [vmem:[#allocation2 + $0x30] sm:$0xff] %v429
        %438 = vst [vmem:[#allocation2 + $0x38] sm:$0xff] %v430
        %p439 = scmp.eq.s32.totalorder %s29, 1
        // Predicated region
        $region41: #{tpu_custom_call.1} parent=27 // pred_check
          %p440 = pneg %p439
        $region42: #{tpu_custom_call.1} parent=27 // pred_check_branch
          %442 = sbr.rel (%p440) target = $region44
        $region43: #{tpu_custom_call.1} parent=27 // pred_region
          %v443 = vld [vmem:[#allocation2] sm:$0xff]
          %v444 = vld [vmem:[#allocation2 + $0x8] sm:$0xff]
          %v445 = vld [vmem:[#allocation2 + $0x10] sm:$0xff]
          %v446 = vld [vmem:[#allocation2 + $0x18] sm:$0xff]
          %v447 = vld [vmem:[#allocation2 + $0x20] sm:$0xff]
          %v448 = vld [vmem:[#allocation2 + $0x28] sm:$0xff]
          %v449 = vld [vmem:[#allocation2 + $0x30] sm:$0xff]
          %v450 = vld [vmem:[#allocation2 + $0x38] sm:$0xff]
          %451 = vst [vmem:[%s231] sm:$0xff] %v443
          %452 = vst [vmem:[%s231 + $0x8] sm:$0xff] %v444
          %453 = vst [vmem:[%s231 + $0x10] sm:$0xff] %v445
          %454 = vst [vmem:[%s231 + $0x18] sm:$0xff] %v446
          %455 = vst [vmem:[%s231 + $0x20] sm:$0xff] %v447
          %456 = vst [vmem:[%s231 + $0x28] sm:$0xff] %v448
          %457 = vst [vmem:[%s231 + $0x30] sm:$0xff] %v449
          %458 = vst [vmem:[%s231 + $0x38] sm:$0xff] %v450
        $region44: #{tpu_custom_call.1} parent=27 // pred_fallthru
          _
        %s459 = sand.u32 %s107, 1
        %s460 = scalar_lea.sflag [#allocation5], %s459
        %s461 = sand.u32 %s107, 1
        %s462 = smul.addr %s461, 64
        %s463 = scalar_lea.vmem [#allocation8], %s462
        // Predicated region
        $region45: #{tpu_custom_call.1} parent=27 // pred_check
          %p464 = pneg %p117
        $region46: #{tpu_custom_call.1} parent=27 // pred_check_branch
          %466 = sbr.rel (%p464) target = $region48
        $region47: #{tpu_custom_call.1} parent=27 // pred_region
          %s467 = smul.u32 4, %s27
          %s468 = smul.u32 2, %s28
          %s470 = ssub.s32 1024, 1024
          %471 = vsyncadd %s460, %s470
          %s472 = smul.addr %s467, 6
          %s473 = sadd.s32 %s468, %s472
          %s474 = smul.addr %s473, 128
          %s475 = scalar_lea.hbm %s2, %s474
          %s476 = sshll.u32 %s463, 4
          %s477 = int_to_ptr.vmem [resolvable:$true] %s476
          %482 = dma.vmem_to_hbm [thread:$0]  %s477, 1024, %s475, %s460, 256, 768, 16
        $region48: #{tpu_custom_call.1} parent=27 // pred_fallthru
          _
      $region28: #{tpu_custom_call.1} parent=5 // pred_fallthru
        _
      %p483 = scmp.le.s32.totalorder 2, %s17
      // Predicated region
      $region49: #{tpu_custom_call.1} parent=5 // pred_check
        %p484 = pneg %p483
      $region50: #{tpu_custom_call.1} parent=5 // pred_check_branch
        %486 = sbr.rel (%p484) target = $region52
      $region51: #{tpu_custom_call.1} parent=5 // pred_region
        %s487 = ssub.s32 %s17, 2
        // Predicated region
        $region53: #{tpu_custom_call.1} parent=51 // pred_check
          %p488 = pneg %p123
        $region54: #{tpu_custom_call.1} parent=51 // pred_check_branch
          %490 = sbr.rel (%p488) target = $region56
        $region55: #{tpu_custom_call.1} parent=51 // pred_region
          %s491 = sand.u32 %s108, 1
          %s492 = scalar_lea.sflag [#allocation5], %s491
          %s493 = sand.u32 %s108, 1
          %s494 = smul.addr %s493, 64
          %s495 = scalar_lea.vmem [#allocation8], %s494
          %496 = dma.done %s492, 1024
        $region56: #{tpu_custom_call.1} parent=51 // pred_fallthru
          _
      $region52: #{tpu_custom_call.1} parent=5 // pred_fallthru
        _
    $region6: #{tpu_custom_call.1} parent=1 // loop_footer
      %s21 = sadd.s32 1, %s17
    $region7: #{tpu_custom_call.1} parent=1 // loop_footer_branch
      %16 = sbr.rel target = $region3
    $region8: #{tpu_custom_call.1} parent=1 // loop_exit
      _
    %497 = vsyncpa [#allocation4], 1
    %s498 = scalar_lea.sflag [#allocation4], 1
    %499 = vsyncpa %s498, 1
    %500 = vsyncpa [#allocation7], 1
    %s501 = scalar_lea.sflag [#allocation7], 1
    %502 = vsyncpa %s501, 1
    %503 = vsyncpa [#allocation5], 1
    %s504 = scalar_lea.sflag [#allocation5], 1
    %505 = vsyncpa %s504, 1

</llo_original>
